<compile_context>
chip_gen: v5e
topology: v5e:2x2
jax: 0.10.0
libtpu: 0.0.40
codegen_flags: <defaults>
</compile_context>

<pallas_src>
import jax
import jax.numpy as jnp
from jax.experimental import pallas as pl
from jax.experimental.pallas import tpu as pltpu


def _round_up(x, m):
    return (x + m - 1) // m * m


def decoder_kernel(z_ref, w1_ref, b1_ref, w2_ref, b2_ref, out_ref, h_ref):
    """Grid = (batch tiles, output-feature tiles)."""
    # fc1 + softplus once per batch tile (first N step); reused for all N tiles.
    @pl.when(pl.program_id(1) == 0)
    def _():
        h_lin = (
            jnp.dot(z_ref[...], w1_ref[...], preferred_element_type=jnp.float32)
            + b1_ref[...]
        )
        # Stable softplus: max(x, 0) + log1p(exp(-|x|)) — branch-free, no
        # overflow path (matches torch.nn.Softplus up to ~2e-9 at threshold).
        sp = jnp.maximum(h_lin, 0.0) + jnp.log1p(jnp.exp(-jnp.abs(h_lin)))
        h_ref[...] = sp.astype(h_ref.dtype)

    # fc21 on this N tile (f32 accumulation on the MXU).
    o_lin = (
        jnp.dot(h_ref[...], w2_ref[...], preferred_element_type=jnp.float32)
        + b2_ref[...]
    )
    # Sigmoid via a single tanh EUP op + VALU mul/add (exact, 1 EUP push/elem).
    out_ref[...] = (0.5 + 0.5 * jnp.tanh(0.5 * o_lin)).astype(out_ref.dtype)


def decoder_forward(z, w1, b1, w2, b2, *, block_batch=512, block_n=2048,
                    matmul_dtype=jnp.bfloat16, out_dtype=jnp.bfloat16):
    """z: [B, z_dim]; w1: [z_dim, hidden]; b1: [1, hidden];
    w2: [hidden, data_size]; b2: [1, data_size] -> [B, data_size].

    Defaults are the fast path (bf16 matmul inputs / bf16 output, f32
    accumulation + epilogue).  Pass matmul_dtype=out_dtype=jnp.float32 for
    tight parity with the f32 PyTorch reference.
    """
    B, z_dim = z.shape
    hidden_dim = w1.shape[1]
    data_size = w2.shape[1]

    # --- Pad hidden_dim to a multiple of 128: full MXU tiles for both matmuls
    # and a lane-dense softplus.  Padded hidden units see w1 col / b1 = 0
    # (softplus(0) = log 2) but their w2 rows are 0, so they contribute nothing.
    h_pad = _round_up(hidden_dim, 128)
    if h_pad != hidden_dim:
        w1 = jnp.pad(w1, ((0, 0), (0, h_pad - hidden_dim)))
        b1 = jnp.pad(b1, ((0, 0), (0, h_pad - hidden_dim)))
        w2 = jnp.pad(w2, ((0, h_pad - hidden_dim), (0, 0)))

    # --- N (output-feature) tiling: lane-dense (multiple of 128) so the final
    # store is an unmasked vst, and small enough that w2/b2/out tiles fit v7x's
    # 64 MiB VMEM even at image-scale data_size.  For small data_size this is a
    # single block (w2 stays VMEM-resident across the whole grid).
    tn = min(_round_up(block_n, 128), _round_up(data_size, 128))
    d_pad = _round_up(data_size, tn)
    if d_pad != data_size:
        w2 = jnp.pad(w2, ((0, 0), (0, d_pad - data_size)))
        b2 = jnp.pad(b2, ((0, 0), (0, d_pad - data_size)))
    n_blocks_n = d_pad // tn

    # --- Batch tiling: multiple of 16 (bf16 sublane pack), large tiles to
    # amortize the ~0.35 us per-grid-step overhead, but at most ceil(B/2) so
    # there are >= 2 batch blocks and both v7x TensorCores get work
    # (no-op on single-TC v5e/v6e).
    tb = min(block_batch, _round_up(pl.cdiv(B, 2), 16))
    tb = max(16, _round_up(tb, 16))
    b_pad = _round_up(B, tb)
    if b_pad != B:
        z = jnp.pad(z, ((0, b_pad - B), (0, 0)))
    n_blocks_b = b_pad // tb

    # --- bf16 matmul inputs (f32 accumulation) halve weight/activation DMA;
    # biases and the elementwise epilogue stay f32.
    z = z.astype(matmul_dtype)
    w1 = w1.astype(matmul_dtype)
    w2 = w2.astype(matmul_dtype)
    b1 = b1.astype(jnp.float32)
    b2 = b2.astype(jnp.float32)

    mm_bytes = jnp.dtype(matmul_dtype).itemsize
    out_bytes = jnp.dtype(out_dtype).itemsize
    cost = pl.CostEstimate(
        flops=2 * b_pad * (z_dim * h_pad + h_pad * d_pad),
        transcendentals=b_pad * (h_pad + d_pad),  # exp (softplus) + tanh (sigmoid)
        bytes_accessed=(b_pad * z_dim * mm_bytes
                        + z_dim * h_pad * mm_bytes
                        + h_pad * d_pad * mm_bytes
                        * (n_blocks_b if n_blocks_n > 1 else 1)
                        + (h_pad + d_pad) * 4
                        + b_pad * d_pad * out_bytes),
    )

    out_padded = pl.pallas_call(
        decoder_kernel,
        out_shape=jax.ShapeDtypeStruct((b_pad, d_pad), out_dtype),
        grid=(n_blocks_b, n_blocks_n),
        in_specs=[
            pl.BlockSpec((tb, z_dim), lambda i, n: (i, 0)),     # z : batch-blocked
            pl.BlockSpec((z_dim, h_pad), lambda i, n: (0, 0)),  # w1: VMEM-resident
            pl.BlockSpec((1, h_pad), lambda i, n: (0, 0)),      # b1: VMEM-resident
            pl.BlockSpec((h_pad, tn), lambda i, n: (0, n)),     # w2: N-tiled
            pl.BlockSpec((1, tn), lambda i, n: (0, n)),         # b2: N-tiled
        ],
        out_specs=pl.BlockSpec((tb, tn), lambda i, n: (i, n)),
        scratch_shapes=[pltpu.VMEM((tb, h_pad), matmul_dtype)],  # hidden activation
        compiler_params=pltpu.CompilerParams(
            dimension_semantics=("parallel", "arbitrary"),  # batch tiles across TCs
            vmem_limit_bytes=48 * 1024 * 1024,              # < v7x 64 MiB physical
        ),
        cost_estimate=cost,
    )(z, w1, b1, w2, b2)

    return out_padded[:B, :data_size]


def init_decoder_params(key, z_dim, hidden_dim, data_size):
    """Deterministic init mimicking nn.Linear's U(-1/sqrt(fan_in), 1/sqrt(fan_in))."""
    k1, k2, k3, k4 = jax.random.split(key, 4)
    bound1 = 1.0 / jnp.sqrt(z_dim)
    bound2 = 1.0 / jnp.sqrt(hidden_dim)
    # stored as [in, out] (transpose of PyTorch's [out, in] weight layout)
    w1 = jax.random.uniform(k1, (z_dim, hidden_dim), jnp.float32, -bound1, bound1)
    b1 = jax.random.uniform(k2, (1, hidden_dim), jnp.float32, -bound1, bound1)
    w2 = jax.random.uniform(k3, (hidden_dim, data_size), jnp.float32, -bound2, bound2)
    b2 = jax.random.uniform(k4, (1, data_size), jnp.float32, -bound2, bound2)
    return w1, b1, w2, b2


def decoder_ref(z, w1, b1, w2, b2):
    """Pure-JAX f32 reference for correctness checking."""
    hidden = jax.nn.softplus(
        jnp.dot(z, w1, precision=jax.lax.Precision.HIGHEST) + b1)
    return jax.nn.sigmoid(
        jnp.dot(hidden, w2, precision=jax.lax.Precision.HIGHEST) + b2)


if __name__ == "__main__":
    # Small shapes consistent with Decoder(data_size, z_dim, hidden_dim).
    # batch=24 with block_batch=16 -> 2 batch tiles (exercises the grid and the
    # >=2-blocks-for-megacore rule); data_size=300 exercises lane padding and,
    # with block_n=128, a 3-step N axis that reuses the hidden-scratch.
    batch, z_dim, hidden_dim, data_size = 24, 8, 32, 300

    key = jax.random.PRNGKey(0)
    kz, kp = jax.random.split(key)
    z = jax.random.normal(kz, (batch, z_dim), jnp.float32)
    w1, b1, w2, b2 = init_decoder_params(kp, z_dim, hidden_dim, data_size)

    expected = decoder_ref(z, w1, b1, w2, b2)

    # Default fast path: bf16 matmul inputs and bf16 output, f32 accumulation.
    out = decoder_forward(z, w1, b1, w2, b2, block_batch=16)
    out = jax.block_until_ready(out)
    assert out.shape == (batch, data_size)
    assert jnp.allclose(out.astype(jnp.float32), expected, atol=2e-2, rtol=2e-2)

    # f32 parity path (exact sigmoid via tanh), multi-block N axis.
    out_f32 = decoder_forward(z, w1, b1, w2, b2, block_batch=16, block_n=128,
                              matmul_dtype=jnp.float32, out_dtype=jnp.float32)
    out_f32 = jax.block_until_ready(out_f32)
    assert out_f32.shape == (batch, data_size)
    assert jnp.allclose(out_f32, expected, atol=2e-3, rtol=2e-3)

    print("KERNEL_OK")
</pallas_src>

<mosaic_0001>
module attributes {stable_mosaic.version = 11 : i64} {
  func.func @decoder_kernel(%arg0: i32, %arg1: i32, %arg2: memref<16x8xbf16, #tpu.memory_space<vmem>>, %arg3: memref<8x128xbf16, #tpu.memory_space<vmem>>, %arg4: memref<1x128xf32, #tpu.memory_space<vmem>>, %arg5: memref<128x384xbf16, #tpu.memory_space<vmem>>, %arg6: memref<1x384xf32, #tpu.memory_space<vmem>>, %arg7: memref<16x384xbf16, #tpu.memory_space<vmem>>, %arg8: memref<16x128xbf16, #tpu.memory_space<vmem>>) attributes {dimension_semantics = [#tpu.dimension_semantics<parallel>, #tpu.dimension_semantics<arbitrary>], iteration_bounds = array<i64: 2, 1>, scalar_prefetch = 0 : i64, scratch_operands = 1 : i64, tpu.core_type = #tpu.core_type<tc>, window_params = [{transform_indices = @transform_0, window_bounds = array<i64: 16, 8>}, {pipeline_mode = #tpu.pipeline_mode<synchronous>, transform_indices = @transform_1, window_bounds = array<i64: 8, 128>}, {pipeline_mode = #tpu.pipeline_mode<synchronous>, transform_indices = @transform_2, window_bounds = array<i64: 1, 128>}, {transform_indices = @transform_3, window_bounds = array<i64: 128, 384>}, {transform_indices = @transform_4, window_bounds = array<i64: 1, 384>}, {transform_indices = @transform_5, window_bounds = array<i64: 16, 384>}]} {
    %c0_i32 = arith.constant 0 : i32
    %0 = arith.cmpi eq, %arg1, %c0_i32 : i32
    %1 = arith.extui %0 : i1 to i32
    %c0_i32_0 = arith.constant 0 : i32
    %2 = arith.cmpi ne, %1, %c0_i32_0 : i32
    scf.if %2 {
      %c0_11 = arith.constant 0 : index
      %c0_12 = arith.constant 0 : index
      %18 = vector.load %arg2[%c0_11, %c0_12] : memref<16x8xbf16, #tpu.memory_space<vmem>>, vector<16x8xbf16>
      %c0_13 = arith.constant 0 : index
      %c0_14 = arith.constant 0 : index
      %19 = vector.load %arg3[%c0_13, %c0_14] : memref<8x128xbf16, #tpu.memory_space<vmem>>, vector<8x128xbf16>
      %cst_15 = arith.constant dense<0.000000e+00> : vector<16x128xf32>
      %20 = tpu.matmul %18, %19, %cst_15 {dimension_numbers = #tpu.dot_dimension_numbers<[1], [0], [0], [1], [0, 0, 1, 1], [], []>} : vector<16x8xbf16>, vector<8x128xbf16>, vector<16x128xf32> -> vector<16x128xf32>
      %c0_16 = arith.constant 0 : index
      %c0_17 = arith.constant 0 : index
      %21 = vector.load %arg4[%c0_16, %c0_17] : memref<1x128xf32, #tpu.memory_space<vmem>>, vector<1x128xf32>
      %22 = vector.broadcast %21 : vector<1x128xf32> to vector<16x128xf32>
      %23 = arith.addf %20, %22 : vector<16x128xf32>
      %cst_18 = arith.constant 0.000000e+00 : f32
      %24 = vector.broadcast %cst_18 : f32 to vector<16x128xf32>
      %25 = arith.maximumf %23, %24 : vector<16x128xf32>
      %26 = math.absf %23 : vector<16x128xf32>
      %cst_19 = arith.constant 0.000000e+00 : f32
      %27 = vector.broadcast %cst_19 : f32 to vector<16x128xf32>
      %28 = arith.subf %27, %26 : vector<16x128xf32>
      %29 = math.exp %28 : vector<16x128xf32>
      %30 = math.log1p %29 : vector<16x128xf32>
      %31 = arith.addf %25, %30 : vector<16x128xf32>
      %32 = arith.truncf %31 : vector<16x128xf32> to vector<16x128xbf16>
      %c0_20 = arith.constant 0 : index
      %c0_21 = arith.constant 0 : index
      %33 = vector.load %arg8[%c0_20, %c0_21] : memref<16x128xbf16, #tpu.memory_space<vmem>>, vector<16x128xbf16>
      tpu.vector_store %arg8[%c0_20, %c0_21], %32 {strides = array<i32>} : memref<16x128xbf16, #tpu.memory_space<vmem>>, vector<16x128xbf16>,
    } else {
    }
    %c0 = arith.constant 0 : index
    %c0_1 = arith.constant 0 : index
    %3 = vector.load %arg8[%c0, %c0_1] : memref<16x128xbf16, #tpu.memory_space<vmem>>, vector<16x128xbf16>
    %c0_2 = arith.constant 0 : index
    %c0_3 = arith.constant 0 : index
    %4 = vector.load %arg5[%c0_2, %c0_3] : memref<128x384xbf16, #tpu.memory_space<vmem>>, vector<128x384xbf16>
    %cst = arith.constant dense<0.000000e+00> : vector<16x384xf32>
    %5 = tpu.matmul %3, %4, %cst {dimension_numbers = #tpu.dot_dimension_numbers<[1], [0], [0], [1], [0, 0, 1, 1], [], []>} : vector<16x128xbf16>, vector<128x384xbf16>, vector<16x384xf32> -> vector<16x384xf32>
    %c0_4 = arith.constant 0 : index
    %c0_5 = arith.constant 0 : index
    %6 = vector.load %arg6[%c0_4, %c0_5] : memref<1x384xf32, #tpu.memory_space<vmem>>, vector<1x384xf32>
    %7 = vector.broadcast %6 : vector<1x384xf32> to vector<16x384xf32>
    %8 = arith.addf %5, %7 : vector<16x384xf32>
    %cst_6 = arith.constant 5.000000e-01 : f32
    %9 = vector.broadcast %cst_6 : f32 to vector<16x384xf32>
    %10 = arith.mulf %9, %8 : vector<16x384xf32>
    %11 = math.tanh %10 : vector<16x384xf32>
    %cst_7 = arith.constant 5.000000e-01 : f32
    %12 = vector.broadcast %cst_7 : f32 to vector<16x384xf32>
    %13 = arith.mulf %12, %11 : vector<16x384xf32>
    %cst_8 = arith.constant 5.000000e-01 : f32
    %14 = vector.broadcast %cst_8 : f32 to vector<16x384xf32>
    %15 = arith.addf %14, %13 : vector<16x384xf32>
    %16 = arith.truncf %15 : vector<16x384xf32> to vector<16x384xbf16>
    %c0_9 = arith.constant 0 : index
    %c0_10 = arith.constant 0 : index
    %17 = vector.load %arg7[%c0_9, %c0_10] : memref<16x384xbf16, #tpu.memory_space<vmem>>, vector<16x384xbf16>
    tpu.vector_store %arg7[%c0_9, %c0_10], %16 {strides = array<i32>} : memref<16x384xbf16, #tpu.memory_space<vmem>>, vector<16x384xbf16>,
    return
  }
  func.func @transform_0(%arg0: i32, %arg1: i32) -> (i32, i32) {
    %c0_i32 = arith.constant 0 : i32
    %c0_i32_0 = arith.constant 0 : i32
    return %arg0, %c0_i32 : i32, i32
  }
  func.func @transform_1(%arg0: i32, %arg1: i32) -> (i32, i32) {
    %c0_i32 = arith.constant 0 : i32
    %c0_i32_0 = arith.constant 0 : i32
    %c0_i32_1 = arith.constant 0 : i32
    return %c0_i32, %c0_i32_0 : i32, i32
  }
  func.func @transform_2(%arg0: i32, %arg1: i32) -> (i32, i32) {
    %c0_i32 = arith.constant 0 : i32
    %c0_i32_0 = arith.constant 0 : i32
    %c0_i32_1 = arith.constant 0 : i32
    return %c0_i32, %c0_i32_0 : i32, i32
  }
  func.func @transform_3(%arg0: i32, %arg1: i32) -> (i32, i32) {
    %c0_i32 = arith.constant 0 : i32
    %c0_i32_0 = arith.constant 0 : i32
    return %c0_i32, %arg1 : i32, i32
  }
  func.func @transform_4(%arg0: i32, %arg1: i32) -> (i32, i32) {
    %c0_i32 = arith.constant 0 : i32
    %c0_i32_0 = arith.constant 0 : i32
    return %c0_i32, %arg1 : i32, i32
  }
  func.func @transform_5(%arg0: i32, %arg1: i32) -> (i32, i32) {
    %c0_i32 = arith.constant 0 : i32
    return %arg0, %arg1 : i32, i32
  }
}

</mosaic_0001>

<llo_original>
// kernel: tpu_custom_call.1
$region0: #{tpu_custom_call.1}
  #allocation0 [shape = 'u32[]', space=smem, size = 0x4, offset = 0x4, fixed_abs, tag = 'smem constant byte address 0x4 - core index']
  #allocation1 [shape = 'u32[72,128]{1,0:T(1,128)}', space=vmem, size = 0x9000, scoped, tag = 'internal scratch']
  #allocation2 [shape = 'bf16[16,128]{1,0:T(8,128)(2,1)}', space=vmem, size = 0x1000, scoped, tag = 'scratch operand']
  %s0 = inlined_call_operand.vmem [shape: bf16[32,8], index: 0, kind: input, shape index: {}]
  %s1 = inlined_call_operand.vmem [shape: bf16[8,128], index: 1, kind: input, shape index: {}]
  %s2 = inlined_call_operand.vmem [shape: f32[1,128], index: 2, kind: input, shape index: {}]
  %s3 = inlined_call_operand.hbm [shape: bf16[128,384], index: 3, kind: input, shape index: {}]
  %s4 = inlined_call_operand.vmem [shape: f32[1,384], index: 4, kind: input, shape index: {}]
  %s5 = inlined_call_operand.hbm [shape: bf16[32,384], index: 5, kind: output, shape index: {}]
  %s6 = sld [smem:[#allocation0]]
  $region61: #{tpu_custom_call.1} parent=0
    _
  %s8 = ssub.s32 1, %s6
  %s9 = scalar_select 0, %s8, %s6
  $region1: #{tpu_custom_call.1} parent=0
    #allocation3 [shape = 'u8[98304]{0}', space=vmem, size = 0x18000, scoped, tag = 'input window, operand 3, single buffered']
    #allocation4 [shape = 's32[2]{0}', space=sflag, size = 0x8, scoped, tag = 'scoped memory for tpu_custom_call.1']
    #allocation5 [shape = 's32[2]{0}', space=sflag, size = 0x8, scoped, tag = 'scoped memory for tpu_custom_call.1']
    #allocation6 [shape = 'u8[24576]{0}', space=vmem, size = 0x6000, scoped, tag = 'output window, operand 0']
    %10 = vsyncpa [#allocation4], 0
    %11 = vsyncpa [#allocation5], 0
    %s12 = scalar_lea.sflag [#allocation5], 1
    %13 = vsyncpa %s12, 0
    loop: start=0, step=1, limit=4
    $region2: #{tpu_custom_call.1} parent=1 // loop_pre_header
      _
    $region3: #{tpu_custom_call.1} parent=1 // loop_header
      %s15 = sphi 0, %s19
      %p16 = scmp.ge.s32.totalorder %s15, 4
      %s22 = sphi 0, %s34
      %s23 = sphi 0, %s30
      %s24 = sphi 0, %s22
      %s25 = sphi 0, %s23
      %s26 = sphi 0, %s24
      %s27 = sphi 0, %s25
      %s37 = sphi 0, %s39
      %s40 = sphi 0, %s37
      %s41 = sphi 0, %s40
      %s57 = sphi 0, %s41
      %s61 = sphi 0, %s61
      %s63 = sphi 0, %s61
      %s64 = sphi 0, %s63
      %s78 = sphi 0, %s64
      %s82 = sphi 0, %s82
      %s84 = sphi 0, %s82
      %s85 = sphi 0, %s84
      %s99 = sphi 0, %s85
      %s105 = sphi 0, %s107
      %s108 = sphi 0, %s105
      %s109 = sphi 0, %s108
      %s125 = sphi 0, %s109
      %s131 = sphi 0, %s133
      %s134 = sphi 0, %s131
      %s135 = sphi 0, %s134
      %s151 = sphi 0, %s135
      %s159 = sphi 0, %s161
      %s162 = sphi 0, %s159
      %s163 = sphi 0, %s162
      %s179 = sphi 0, %s163
    $region4: #{tpu_custom_call.1} parent=1 // loop_header_branch
      %18 = sbr.rel (%p16) target = $region8
    $region5: #{tpu_custom_call.1} parent=1 // loop_body
      %s20 = ssub.s32 %s15, 1
      %s21 = ssub.s32 %s15, 2
      %s28 = sadd.s32 1, %s23
      %p29 = scmp.ge.s32.totalorder %s28, 1
      %s30 = scalar_select %p29, 0, %s28
      %s31 = sadd.s32 1, %s22
      %s32 = scalar_select %p29, %s31, %s22
      %p33 = scmp.ge.s32.totalorder %s32, 2
      %s34 = scalar_select %p33, 0, %s32
      %s35 = ssub.s32 %s22, %s34
      %p36 = scmp.eq.s32.totalorder %s35, 0
      %s38 = sadd.s32 %s37, 1
      %s39 = scalar_select %p36, %s37, %s38
      %p42 = pneg %p36
      %p43 = scmp.eq.s32.totalorder %s15, 1
      %p44 = por %p42, %p43
      %p45 = scmp.ne.s32.totalorder %s37, %s40
      %p46 = scmp.eq.s32.totalorder %s15, 0
      %p47 = por %p45, %p46
      %p48 = scmp.ne.s32.totalorder %s37, %s40
      %p49 = scmp.eq.s32.totalorder %s20, 1
      %p50 = por %p48, %p49
      %p51 = scmp.ne.s32.totalorder %s40, %s41
      %p52 = scmp.eq.s32.totalorder %s20, 0
      %p53 = por %p51, %p52
      %p54 = scmp.ne.s32.totalorder %s40, %s41
      %p55 = scmp.eq.s32.totalorder %s21, 1
      %p56 = por %p54, %p55
      %p58 = scmp.ne.s32.totalorder %s41, %s57
      %p59 = scmp.eq.s32.totalorder %s21, 0
      %p60 = por %p58, %p59
      %s62 = sadd.s32 %s61, 1
      %p65 = scmp.eq.s32.totalorder %s15, 1
      %p66 = scmp.ne.s32.totalorder %s61, %s63
      %p67 = scmp.eq.s32.totalorder %s15, 0
      %p68 = por %p66, %p67
      %p69 = scmp.ne.s32.totalorder %s61, %s63
      %p70 = scmp.eq.s32.totalorder %s20, 1
      %p71 = por %p69, %p70
      %p72 = scmp.ne.s32.totalorder %s63, %s64
      %p73 = scmp.eq.s32.totalorder %s20, 0
      %p74 = por %p72, %p73
      %p75 = scmp.ne.s32.totalorder %s63, %s64
      %p76 = scmp.eq.s32.totalorder %s21, 1
      %p77 = por %p75, %p76
      %p79 = scmp.ne.s32.totalorder %s64, %s78
      %p80 = scmp.eq.s32.totalorder %s21, 0
      %p81 = por %p79, %p80
      %s83 = sadd.s32 %s82, 1
      %p86 = scmp.eq.s32.totalorder %s15, 1
      %p87 = scmp.ne.s32.totalorder %s82, %s84
      %p88 = scmp.eq.s32.totalorder %s15, 0
      %p89 = por %p87, %p88
      %p90 = scmp.ne.s32.totalorder %s82, %s84
      %p91 = scmp.eq.s32.totalorder %s20, 1
      %p92 = por %p90, %p91
      %p93 = scmp.ne.s32.totalorder %s84, %s85
      %p94 = scmp.eq.s32.totalorder %s20, 0
      %p95 = por %p93, %p94
      %p96 = scmp.ne.s32.totalorder %s84, %s85
      %p97 = scmp.eq.s32.totalorder %s21, 1
      %p98 = por %p96, %p97
      %p100 = scmp.ne.s32.totalorder %s85, %s99
      %p101 = scmp.eq.s32.totalorder %s21, 0
      %p102 = por %p100, %p101
      %s103 = ssub.s32 %s23, %s30
      %p104 = scmp.eq.s32.totalorder %s103, 0
      %s106 = sadd.s32 %s105, 1
      %s107 = scalar_select %p104, %s105, %s106
      %p110 = pneg %p104
      %p111 = scmp.eq.s32.totalorder %s15, 1
      %p112 = por %p110, %p111
      %p113 = scmp.ne.s32.totalorder %s105, %s108
      %p114 = scmp.eq.s32.totalorder %s15, 0
      %p115 = por %p113, %p114
      %p116 = scmp.ne.s32.totalorder %s105, %s108
      %p117 = scmp.eq.s32.totalorder %s20, 1
      %p118 = por %p116, %p117
      %p119 = scmp.ne.s32.totalorder %s108, %s109
      %p120 = scmp.eq.s32.totalorder %s20, 0
      %p121 = por %p119, %p120
      %p122 = scmp.ne.s32.totalorder %s108, %s109
      %p123 = scmp.eq.s32.totalorder %s21, 1
      %p124 = por %p122, %p123
      %p126 = scmp.ne.s32.totalorder %s109, %s125
      %p127 = scmp.eq.s32.totalorder %s21, 0
      %p128 = por %p126, %p127
      %s129 = ssub.s32 %s23, %s30
      %p130 = scmp.eq.s32.totalorder %s129, 0
      %s132 = sadd.s32 %s131, 1
      %s133 = scalar_select %p130, %s131, %s132
      %p136 = pneg %p130
      %p137 = scmp.eq.s32.totalorder %s15, 1
      %p138 = por %p136, %p137
      %p139 = scmp.ne.s32.totalorder %s131, %s134
      %p140 = scmp.eq.s32.totalorder %s15, 0
      %p141 = por %p139, %p140
      %p142 = scmp.ne.s32.totalorder %s131, %s134
      %p143 = scmp.eq.s32.totalorder %s20, 1
      %p144 = por %p142, %p143
      %p145 = scmp.ne.s32.totalorder %s134, %s135
      %p146 = scmp.eq.s32.totalorder %s20, 0
      %p147 = por %p145, %p146
      %p148 = scmp.ne.s32.totalorder %s134, %s135
      %p149 = scmp.eq.s32.totalorder %s21, 1
      %p150 = por %p148, %p149
      %p152 = scmp.ne.s32.totalorder %s135, %s151
      %p153 = scmp.eq.s32.totalorder %s21, 0
      %p154 = por %p152, %p153
      %s155 = ssub.s32 %s22, %s34
      %s156 = ssub.s32 %s23, %s30
      %s157 = sor.u32 %s155, %s156
      %p158 = scmp.eq.s32.totalorder %s157, 0
      %s160 = sadd.s32 %s159, 1
      %s161 = scalar_select %p158, %s159, %s160
      %p164 = pneg %p158
      %p165 = scmp.eq.s32.totalorder %s15, 1
      %p166 = por %p164, %p165
      %p167 = scmp.ne.s32.totalorder %s159, %s162
      %p168 = scmp.eq.s32.totalorder %s15, 0
      %p169 = por %p167, %p168
      %p170 = scmp.ne.s32.totalorder %s159, %s162
      %p171 = scmp.eq.s32.totalorder %s20, 1
      %p172 = por %p170, %p171
      %p173 = scmp.ne.s32.totalorder %s162, %s163
      %p174 = scmp.eq.s32.totalorder %s20, 0
      %p175 = por %p173, %p174
      %p176 = scmp.ne.s32.totalorder %s162, %s163
      %p177 = scmp.eq.s32.totalorder %s21, 1
      %p178 = por %p176, %p177
      %p180 = scmp.ne.s32.totalorder %s163, %s179
      %p181 = scmp.eq.s32.totalorder %s21, 0
      %p182 = por %p180, %p181
      %p183 = scmp.le.s32.totalorder 1, %s15
      %p184 = scmp.lt.s32.totalorder %s15, 3
      %p185 = pnand %p183, %p184
      %p186 = pneg %p185
      // Predicated region
      $region9: #{tpu_custom_call.1} parent=5 // pred_check
        _
      $region10: #{tpu_custom_call.1} parent=5 // pred_check_branch
        %188 = sbr.rel (%p185) target = $region12
      $region11: #{tpu_custom_call.1} parent=5 // pred_region
        %s189 = ssub.s32 %s15, 1
        // Predicated region
        $region13: #{tpu_custom_call.1} parent=11 // pred_check
          %p190 = pneg %p74
        $region14: #{tpu_custom_call.1} parent=11 // pred_check_branch
          %192 = sbr.rel (%p190) target = $region16
        $region15: #{tpu_custom_call.1} parent=11 // pred_region
          _
        $region16: #{tpu_custom_call.1} parent=11 // pred_fallthru
          _
        // Predicated region
        $region17: #{tpu_custom_call.1} parent=11 // pred_check
          %p193 = pneg %p95
        $region18: #{tpu_custom_call.1} parent=11 // pred_check_branch
          %195 = sbr.rel (%p193) target = $region20
        $region19: #{tpu_custom_call.1} parent=11 // pred_region
          _
        $region20: #{tpu_custom_call.1} parent=11 // pred_fallthru
          _
        // Predicated region
        $region21: #{tpu_custom_call.1} parent=11 // pred_check
          %p196 = pneg %p121
        $region22: #{tpu_custom_call.1} parent=11 // pred_check_branch
          %198 = sbr.rel (%p196) target = $region24
        $region23: #{tpu_custom_call.1} parent=11 // pred_region
          %s199 = smul.u32 3, %s25
          %201 = vsyncadd [#allocation4], 0
          %s202 = smul.addr %s199, 4
          %s203 = scalar_lea.hbm %s3, %s202
          %s204 = sshll.u32 %s203, 4
          %s205 = int_to_ptr.hbm [resolvable:$true] %s204
          %s206 = sshll.u32 [#allocation3], 4
          %s207 = int_to_ptr.vmem [resolvable:$true] %s206
          %212 = dma.hbm_to_vmem [thread:$0]  %s205, 3072, %s207, [#allocation4], 192, 192, 12
        $region24: #{tpu_custom_call.1} parent=11 // pred_fallthru
          _
        // Predicated region
        $region25: #{tpu_custom_call.1} parent=11 // pred_check
          %p213 = pneg %p147
        $region26: #{tpu_custom_call.1} parent=11 // pred_check_branch
          %215 = sbr.rel (%p213) target = $region28
        $region27: #{tpu_custom_call.1} parent=11 // pred_region
          %s216 = smul.u32 3, %s25
          %p217 = scmp.lt.s32.totalorder %s216, 2
          %s218 = scalar_select %p217, %s216, 2
          %s219 = scalar_lea.vmem %s4, %s218
          %s220 = smul.u32 3, %s25
        $region28: #{tpu_custom_call.1} parent=11 // pred_fallthru
          _
      $region12: #{tpu_custom_call.1} parent=5 // pred_fallthru
        _
      %p221 = scmp.lt.s32.totalorder %s15, 2
      // Predicated region
      $region29: #{tpu_custom_call.1} parent=5 // pred_check
        %p222 = pneg %p221
      $region30: #{tpu_custom_call.1} parent=5 // pred_check_branch
        %224 = sbr.rel (%p222) target = $region32
      $region31: #{tpu_custom_call.1} parent=5 // pred_region
        // Predicated region
        $region33: #{tpu_custom_call.1} parent=31 // pred_check
          %p225 = pneg %p47
        $region34: #{tpu_custom_call.1} parent=31 // pred_check_branch
          %227 = sbr.rel (%p225) target = $region36
        $region35: #{tpu_custom_call.1} parent=31 // pred_region
          %s228 = smul.u32 2, %s22
          %p229 = scmp.lt.s32.totalorder %s228, 3
          %s230 = scalar_select %p229, %s228, 3
          %s231 = smul.addr %s230, 4
          %s232 = scalar_lea.vmem %s0, %s231
          %s233 = smul.u32 2, %s22
        $region36: #{tpu_custom_call.1} parent=31 // pred_fallthru
          _
      $region32: #{tpu_custom_call.1} parent=5 // pred_fallthru
        _
      %p234 = scmp.le.s32.totalorder 1, %s15
      %p235 = scmp.lt.s32.totalorder %s15, 3
      %p236 = pnand %p234, %p235
      %p237 = pneg %p236
      // Predicated region
      $region37: #{tpu_custom_call.1} parent=5 // pred_check
        _
      $region38: #{tpu_custom_call.1} parent=5 // pred_check_branch
        %239 = sbr.rel (%p236) target = $region40
      $region39: #{tpu_custom_call.1} parent=5 // pred_region
        %s240 = ssub.s32 %s15, 1
        // Predicated region
        $region41: #{tpu_custom_call.1} parent=39 // pred_check
          %p241 = pneg %p121
        $region42: #{tpu_custom_call.1} parent=39 // pred_check_branch
          %243 = sbr.rel (%p241) target = $region44
        $region43: #{tpu_custom_call.1} parent=39 // pred_region
          %245 = dma.done [#allocation4], 3072
        $region44: #{tpu_custom_call.1} parent=39 // pred_fallthru
          _
        %s246 = smul.u32 2, %s24
        %p247 = scmp.lt.s32.totalorder %s246, 3
        %s248 = scalar_select %p247, %s246, 3
        %s249 = smul.addr %s248, 4
        %s250 = scalar_lea.vmem %s0, %s249
        %p251 = pneg %p53
        %p252 = pneg %p50
        %p253 = pneg %p74
        %p254 = pneg %p71
        %p255 = pneg %p95
        %p256 = pneg %p92
        %p257 = pneg %p121
        %p258 = pneg %p118
        %s259 = smul.u32 3, %s25
        %p260 = scmp.lt.s32.totalorder %s259, 2
        %s261 = scalar_select %p260, %s259, 2
        %s262 = scalar_lea.vmem %s4, %s261
        %p263 = pneg %p147
        %p264 = pneg %p144
        %p265 = pneg %p175
        %p266 = pneg %p172
        %s267 = sand.u32 %s162, 1
        %s268 = scalar_lea.sflag [#allocation5], %s267
        %s269 = sand.u32 %s162, 1
        %s270 = smul.addr %s269, 24
        %s271 = scalar_lea.vmem [#allocation6], %s270
        %s272 = smul.u32 2, %s24
        %p273 = scmp.lt.s32.totalorder %s272, 3
        %s274 = scalar_select %p273, %s272, 3
        %s275 = smul.addr %s274, 4
        %s276 = scalar_lea.vmem %s0, %s275
        %s277 = smul.u32 2, %s24
        %s278 = smul.u32 3, %s25
        %s279 = smul.u32 3, %s25
        %p280 = scmp.lt.s32.totalorder %s279, 2
        %s281 = scalar_select %p280, %s279, 2
        %s282 = scalar_lea.vmem %s4, %s281
        %s283 = smul.u32 3, %s25
        %s284 = smul.u32 2, %s24
        %s285 = smul.u32 3, %s25
        %p287 = scmp.eq.s32.totalorder %s25, 0
        // Predicated region
        $region45: #{tpu_custom_call.1} parent=39 // pred_check
          %p288 = pneg %p287
        $region46: #{tpu_custom_call.1} parent=39 // pred_check_branch
          %290 = sbr.rel (%p288) target = $region48
        $region47: #{tpu_custom_call.1} parent=39 // pred_region
          %v291 = vld [vmem:[%s276] sm:$0xf]
          %v292 = vld [vmem:[%s276 + $0x4] sm:$0xf]
          %v293 = vld [vmem:[%s1] sm:$0xf]
          %v294 = vld [vmem:[%s2] sm:$0x1]
          %v296 = vperm.slane %v294, 0
          %v300 = vunpack.c.l.b16 %v291
          %v301 = vunpack.c.l.b16 %v292
          %v302 = vpack.c.b16 %v301, %v300
          %vm303 = vcmask 64512
          %v305 = vsel %vm303, %v302, 0
          %vm307 = vcmask 1043456
          %v309 = vsel %vm307, %v293, 0
          %311 = vmatpush.bf16.msra.mxu0 0
          %312 = vmatpush.bf16.msra.mxu0 0
          %313 = vmatpush.bf16.msra.mxu0 0
          %314 = vmatpush.bf16.msra.mxu0 0
          %315 = vmatpush.bf16.msra.mxu0 0
          %316 = vmatpush.bf16.msra.mxu0 0
          %317 = vmatpush.bf16.msra.mxu0 0
          %318 = vmatpush.bf16.msra.mxu0 %v309
          %319 = vmatmul.bf16.gmra.mxu0 %v305
          %v320 = vpop.f32.mrf.mxu0
          %v321 = vadd.f32 %v296, %v320
          %v322 = vpop.f32.mrf.mxu0
          %v323 = vadd.f32 %v296, %v322
          %324 = vdwg.mxu0
          %v325 = vmax.f32 %v321, 0.0
          %v326 = vmax.f32 %v323, 0.0
          %v327 = vand.u32 2147483647, %v321
          %v328 = vand.u32 2147483647, %v323
          %v329 = vsub.f32 0.0, %v327
          %v330 = vsub.f32 0.0, %v328
          %v331 = vmul.f32 %v329, 1.442695
          %v332 = vpow.pop %v331
          %v333 = vmul.f32 %v330, 1.442695
          %v334 = vpow.pop %v333
          %v335 = vadd.f32 %v332, 1.0
          %v336 = vlog2.pop %v335
          %v337 = vmul.f32 %v336, 0.6931472
          %v338 = vmul.f32 -0.5, %v332
          %v339 = vadd.f32 %v338, 1.0
          %v340 = vmul.f32 %v339, %v332
          %v341 = vand.u32 2147483647, %v332
          %vm342 = vcmp.lt.f32.partialorder %v341, 0.0004427343
          %v343 = vsel %vm342, %v340, %v337
          %v344 = vadd.f32 %v334, 1.0
          %v345 = vlog2.pop %v344
          %v346 = vmul.f32 %v345, 0.6931472
          %v347 = vmul.f32 -0.5, %v334
          %v348 = vadd.f32 %v347, 1.0
          %v349 = vmul.f32 %v348, %v334
          %v350 = vand.u32 2147483647, %v334
          %vm351 = vcmp.lt.f32.partialorder %v350, 0.0004427343
          %v352 = vsel %vm351, %v349, %v346
          %v353 = vadd.f32 %v325, %v343
          %v354 = vadd.f32 %v326, %v352
          %v355 = vpack.c.bf16 %v353, %v353
          %v356 = vpack.c.bf16 %v354, %v354
          %357 = vst [vmem:[#allocation2] sm:$0xf] %v355
          %358 = vst [vmem:[#allocation2 + $0x4] sm:$0xf] %v356
        $region48: #{tpu_custom_call.1} parent=39 // pred_fallthru
          _
        %v359 = vld [vmem:[#allocation2] sm:$0xf]
        %v360 = vld [vmem:[#allocation2 + $0x4] sm:$0xf]
        %v361 = vld [vmem:[#allocation3] sm:$0xff]
        %v362 = vld [vmem:[#allocation3 + $0x8] sm:$0xf]
        %v363 = vld [vmem:[#allocation3 + $0xc] sm:$0xff]
        %v364 = vld [vmem:[#allocation3 + $0x14] sm:$0xf]
        %v365 = vld [vmem:[#allocation3 + $0x18] sm:$0xff]
        %v366 = vld [vmem:[#allocation3 + $0x20] sm:$0xf]
        %v367 = vld [vmem:[#allocation3 + $0x24] sm:$0xff]
        %v368 = vld [vmem:[#allocation3 + $0x2c] sm:$0xf]
        %v369 = vld [vmem:[#allocation3 + $0x30] sm:$0xff]
        %v370 = vld [vmem:[#allocation3 + $0x38] sm:$0xf]
        %v371 = vld [vmem:[#allocation3 + $0x3c] sm:$0xff]
        %v372 = vld [vmem:[#allocation3 + $0x44] sm:$0xf]
        %v373 = vld [vmem:[#allocation3 + $0x48] sm:$0xff]
        %v374 = vld [vmem:[#allocation3 + $0x50] sm:$0xf]
        %v375 = vld [vmem:[#allocation3 + $0x54] sm:$0xff]
        %v376 = vld [vmem:[#allocation3 + $0x5c] sm:$0xf]
        %v377 = vld [vmem:[#allocation3 + $0x60] sm:$0xff]
        %v378 = vld [vmem:[#allocation3 + $0x68] sm:$0xf]
        %v379 = vld [vmem:[#allocation3 + $0x6c] sm:$0xff]
        %v380 = vld [vmem:[#allocation3 + $0x74] sm:$0xf]
        %v381 = vld [vmem:[#allocation3 + $0x78] sm:$0xff]
        %v382 = vld [vmem:[#allocation3 + $0x80] sm:$0xf]
        %v383 = vld [vmem:[#allocation3 + $0x84] sm:$0xff]
        %v384 = vld [vmem:[#allocation3 + $0x8c] sm:$0xf]
        %v385 = vld [vmem:[#allocation3 + $0x90] sm:$0xff]
        %v386 = vld [vmem:[#allocation3 + $0x98] sm:$0xf]
        %v387 = vld [vmem:[#allocation3 + $0x9c] sm:$0xff]
        %v388 = vld [vmem:[#allocation3 + $0xa4] sm:$0xf]
        %v389 = vld [vmem:[#allocation3 + $0xa8] sm:$0xff]
        %v390 = vld [vmem:[#allocation3 + $0xb0] sm:$0xf]
        %v391 = vld [vmem:[#allocation3 + $0xb4] sm:$0xff]
        %v392 = vld [vmem:[#allocation3 + $0xbc] sm:$0xf]
        %v393 = vld [vmem:[%s282] sm:$0x7]
        %v395 = vperm.slane %v393, 0
        %v396 = vperm.slane %v393, 1
        %v397 = vperm.slane %v393, 2
        %v403 = vunpack.c.l.b16 %v359
        %v404 = vunpack.c.l.b16 %v360
        %v405 = vpack.c.b16 %v404, %v403
        %v439 = vunpack.c.l.b16 %v361
        %v440 = vunpack.c.h.b16 %v361
        %v441 = vunpack.c.l.b16 %v362
        %v442 = vunpack.c.l.b16 %v363
        %v443 = vunpack.c.h.b16 %v363
        %v444 = vunpack.c.l.b16 %v364
        %v445 = vunpack.c.l.b16 %v365
        %v446 = vunpack.c.h.b16 %v365
        %v447 = vunpack.c.l.b16 %v366
        %v448 = vunpack.c.l.b16 %v367
        %v449 = vunpack.c.h.b16 %v367
        %v450 = vunpack.c.l.b16 %v368
        %v451 = vunpack.c.l.b16 %v369
        %v452 = vunpack.c.h.b16 %v369
        %v453 = vunpack.c.l.b16 %v370
        %v454 = vunpack.c.l.b16 %v371
        %v455 = vunpack.c.h.b16 %v371
        %v456 = vunpack.c.l.b16 %v372
        %v457 = vunpack.c.l.b16 %v373
        %v458 = vunpack.c.h.b16 %v373
        %v459 = vunpack.c.l.b16 %v374
        %v460 = vunpack.c.l.b16 %v375
        %v461 = vunpack.c.h.b16 %v375
        %v462 = vunpack.c.l.b16 %v376
        %v463 = vunpack.c.l.b16 %v377
        %v464 = vunpack.c.h.b16 %v377
        %v465 = vunpack.c.l.b16 %v378
        %v466 = vunpack.c.l.b16 %v379
        %v467 = vunpack.c.h.b16 %v379
        %v468 = vunpack.c.l.b16 %v380
        %v469 = vunpack.c.l.b16 %v381
        %v470 = vunpack.c.h.b16 %v381
        %v471 = vunpack.c.l.b16 %v382
        %v472 = vunpack.c.l.b16 %v383
        %v473 = vunpack.c.h.b16 %v383
        %v474 = vunpack.c.l.b16 %v384
        %v475 = vunpack.c.l.b16 %v385
        %v476 = vunpack.c.h.b16 %v385
        %v477 = vunpack.c.l.b16 %v386
        %v478 = vunpack.c.l.b16 %v387
        %v479 = vunpack.c.h.b16 %v387
        %v480 = vunpack.c.l.b16 %v388
        %v481 = vunpack.c.l.b16 %v389
        %v482 = vunpack.c.h.b16 %v389
        %v483 = vunpack.c.l.b16 %v390
        %v484 = vunpack.c.l.b16 %v391
        %v485 = vunpack.c.h.b16 %v391
        %v486 = vunpack.c.l.b16 %v392
        %v487 = vpack.c.b16 %v442, %v439
        %v488 = vpack.c.b16 %v443, %v440
        %v489 = vpack.c.b16 %v444, %v441
        %v490 = vpack.c.b16 %v448, %v445
        %v491 = vpack.c.b16 %v449, %v446
        %v492 = vpack.c.b16 %v450, %v447
        %v493 = vpack.c.b16 %v454, %v451
        %v494 = vpack.c.b16 %v455, %v452
        %v495 = vpack.c.b16 %v456, %v453
        %v496 = vpack.c.b16 %v460, %v457
        %v497 = vpack.c.b16 %v461, %v458
        %v498 = vpack.c.b16 %v462, %v459
        %v499 = vpack.c.b16 %v466, %v463
        %v500 = vpack.c.b16 %v467, %v464
        %v501 = vpack.c.b16 %v468, %v465
        %v502 = vpack.c.b16 %v472, %v469
        %v503 = vpack.c.b16 %v473, %v470
        %v504 = vpack.c.b16 %v474, %v471
        %v505 = vpack.c.b16 %v478, %v475
        %v506 = vpack.c.b16 %v479, %v476
        %v507 = vpack.c.b16 %v480, %v477
        %v508 = vpack.c.b16 %v484, %v481
        %v509 = vpack.c.b16 %v485, %v482
        %v510 = vpack.c.b16 %v486, %v483
        %535 = vmatpush.bf16.msra.mxu0 %v508
        %536 = vmatpush.bf16.msra.mxu0 %v505
        %537 = vmatpush.bf16.msra.mxu0 %v502
        %538 = vmatpush.bf16.msra.mxu0 %v499
        %539 = vmatpush.bf16.msra.mxu0 %v496
        %540 = vmatpush.bf16.msra.mxu0 %v493
        %541 = vmatpush.bf16.msra.mxu0 %v490
        %542 = vmatpush.bf16.msra.mxu0 %v487
        %543 = vmatmul.bf16.gmra.mxu0 %v405
        %v544 = vpop.f32.mrf.mxu0
        %v545 = vadd.f32 %v395, %v544
        %v546 = vpop.f32.mrf.mxu0
        %v547 = vadd.f32 %v395, %v546
        %548 = vdwg.mxu0
        %549 = vmatpush.bf16.msra.mxu0 %v509
        %550 = vmatpush.bf16.msra.mxu0 %v506
        %551 = vmatpush.bf16.msra.mxu0 %v503
        %552 = vmatpush.bf16.msra.mxu0 %v500
        %553 = vmatpush.bf16.msra.mxu0 %v497
        %554 = vmatpush.bf16.msra.mxu0 %v494
        %555 = vmatpush.bf16.msra.mxu0 %v491
        %556 = vmatpush.bf16.msra.mxu0 %v488
        %557 = vmatmul.bf16.gmra.mxu0 %v405
        %v558 = vpop.f32.mrf.mxu0
        %v559 = vadd.f32 %v396, %v558
        %v560 = vpop.f32.mrf.mxu0
        %v561 = vadd.f32 %v396, %v560
        %562 = vdwg.mxu0
        %563 = vmatpush.bf16.msra.mxu0 %v510
        %564 = vmatpush.bf16.msra.mxu0 %v507
        %565 = vmatpush.bf16.msra.mxu0 %v504
        %566 = vmatpush.bf16.msra.mxu0 %v501
        %567 = vmatpush.bf16.msra.mxu0 %v498
        %568 = vmatpush.bf16.msra.mxu0 %v495
        %569 = vmatpush.bf16.msra.mxu0 %v492
        %570 = vmatpush.bf16.msra.mxu0 %v489
        %571 = vmatmul.bf16.gmra.mxu0 %v405
        %v572 = vpop.f32.mrf.mxu0
        %v573 = vadd.f32 %v397, %v572
        %v574 = vpop.f32.mrf.mxu0
        %v575 = vadd.f32 %v397, %v574
        %576 = vdwg.mxu0
        %v577 = vmul.f32 %v545, 0.5
        %v578 = vmul.f32 %v559, 0.5
        %v579 = vmul.f32 %v573, 0.5
        %v580 = vmul.f32 %v547, 0.5
        %v581 = vmul.f32 %v561, 0.5
        %v582 = vmul.f32 %v575, 0.5
        %v583 = vtanh.pop %v577
        %v584 = vtanh.pop %v578
        %v585 = vtanh.pop %v579
        %v586 = vtanh.pop %v580
        %v587 = vtanh.pop %v581
        %v588 = vtanh.pop %v582
        %v589 = vmul.f32 %v583, 0.5
        %v590 = vmul.f32 %v584, 0.5
        %v591 = vmul.f32 %v585, 0.5
        %v592 = vmul.f32 %v586, 0.5
        %v593 = vmul.f32 %v587, 0.5
        %v594 = vmul.f32 %v588, 0.5
        %v595 = vadd.f32 %v589, 0.5
        %v596 = vadd.f32 %v590, 0.5
        %v597 = vadd.f32 %v591, 0.5
        %v598 = vadd.f32 %v592, 0.5
        %v599 = vadd.f32 %v593, 0.5
        %v600 = vadd.f32 %v594, 0.5
        %v601 = vpack.c.bf16 %v596, %v595
        %v602 = vpack.c.bf16 %v597, %v597
        %v603 = vpack.c.bf16 %v599, %v598
        %v604 = vpack.c.bf16 %v600, %v600
        %605 = vst [vmem:[%s271] sm:$0xff] %v601
        %606 = vst [vmem:[%s271 + $0x8] sm:$0xf] %v602
        %607 = vst [vmem:[%s271 + $0xc] sm:$0xff] %v603
        %608 = vst [vmem:[%s271 + $0x14] sm:$0xf] %v604
        %s609 = sand.u32 %s162, 1
        %s610 = scalar_lea.sflag [#allocation5], %s609
        %s611 = sand.u32 %s162, 1
        %s612 = smul.addr %s611, 24
        %s613 = scalar_lea.vmem [#allocation6], %s612
        // Predicated region
        $region49: #{tpu_custom_call.1} parent=39 // pred_check
          %p614 = pneg %p172
        $region50: #{tpu_custom_call.1} parent=39 // pred_check_branch
          %616 = sbr.rel (%p614) target = $region52
        $region51: #{tpu_custom_call.1} parent=39 // pred_region
          %s617 = smul.u32 2, %s24
          %s618 = smul.u32 3, %s25
          %620 = vsyncadd %s610, 0
          %s621 = smul.addr %s617, 3
          %s622 = sadd.s32 %s618, %s621
          %s623 = smul.addr %s622, 4
          %s624 = scalar_lea.hbm %s5, %s623
          %s625 = sshll.u32 %s613, 4
          %s626 = int_to_ptr.vmem [resolvable:$true] %s625
          %s627 = sshll.u32 %s624, 4
          %s628 = int_to_ptr.hbm [resolvable:$true] %s627
          %633 = dma.vmem_to_hbm [thread:$0]  %s626, 384, %s628, %s610, 192, 192, 12
        $region52: #{tpu_custom_call.1} parent=39 // pred_fallthru
          _
      $region40: #{tpu_custom_call.1} parent=5 // pred_fallthru
        _
      %p634 = scmp.le.s32.totalorder 2, %s15
      // Predicated region
      $region53: #{tpu_custom_call.1} parent=5 // pred_check
        %p635 = pneg %p634
      $region54: #{tpu_custom_call.1} parent=5 // pred_check_branch
        %637 = sbr.rel (%p635) target = $region56
      $region55: #{tpu_custom_call.1} parent=5 // pred_region
        %s638 = ssub.s32 %s15, 2
        // Predicated region
        $region57: #{tpu_custom_call.1} parent=55 // pred_check
          %p639 = pneg %p178
        $region58: #{tpu_custom_call.1} parent=55 // pred_check_branch
          %641 = sbr.rel (%p639) target = $region60
        $region59: #{tpu_custom_call.1} parent=55 // pred_region
          %s642 = sand.u32 %s163, 1
          %s643 = scalar_lea.sflag [#allocation5], %s642
          %s644 = sand.u32 %s163, 1
          %s645 = smul.addr %s644, 24
          %s646 = scalar_lea.vmem [#allocation6], %s645
          %648 = dma.done %s643, 384
        $region60: #{tpu_custom_call.1} parent=55 // pred_fallthru
          _
      $region56: #{tpu_custom_call.1} parent=5 // pred_fallthru
        _
    $region6: #{tpu_custom_call.1} parent=1 // loop_footer
      %s19 = sadd.s32 1, %s15
    $region7: #{tpu_custom_call.1} parent=1 // loop_footer_branch
      %14 = sbr.rel target = $region3
    $region8: #{tpu_custom_call.1} parent=1 // loop_exit
      _
    %649 = vsyncpa [#allocation4], 1
    %s650 = scalar_lea.sflag [#allocation4], 1
    %651 = vsyncpa %s650, 1
    %652 = vsyncpa [#allocation5], 1
    %s653 = scalar_lea.sflag [#allocation5], 1
    %654 = vsyncpa %s653, 1

</llo_original>
